<compile_context>
chip_gen: v5e
topology: v5e:2x2
jax: 0.10.0
libtpu: 0.0.40
codegen_flags: <defaults>
</compile_context>

<pallas_src>
import math
import functools

import jax
import jax.numpy as jnp
from jax.experimental import pallas as pl
from jax.experimental.pallas import tpu as pltpu


# ---------------------------------------------------------------------------
# Parameter setup (deterministic, mirrors the module's __init__)
# ---------------------------------------------------------------------------
def make_pe_table(d_model, max_len=1024, scale_factor=1.0, dtype=jnp.float32):
    """Sinusoidal positional-encoding table, shape [max_len, d_model]."""
    position = jnp.arange(max_len, dtype=jnp.float32)[:, None]           # [L, 1]
    div_term = jnp.exp(
        jnp.arange(0, d_model, 2, dtype=jnp.float32)
        * (-math.log(10000.0) / d_model)
    )                                                                     # [D/2]
    pe = jnp.zeros((max_len, d_model), jnp.float32)
    pe = pe.at[:, 0::2].set(jnp.sin(position * div_term))
    pe = pe.at[:, 1::2].set(jnp.cos(position * div_term))
    return (scale_factor * pe).astype(dtype)


# ---------------------------------------------------------------------------
# Pallas kernels (operate on [B, ts, D] blocks; pe block is [ts, D])
# ---------------------------------------------------------------------------
def _add_pe_kernel(x_ref, pe_ref, o_ref):
    # Broadcast over the *leading* batch axis: free layout plumbing, no
    # per-step sublane relayout.
    o_ref[...] = x_ref[...] + pe_ref[...][None, :, :].astype(x_ref.dtype)


def _add_pe_dropout_hwprng_kernel(seed_ref, x_ref, pe_ref, o_ref, *,
                                  keep_threshold, inv_keep):
    # TPU-only path: hardware PRNG inside the kernel (no extra HBM traffic).
    # Per-tile reseed -> independent stream per grid step.
    pltpu.prng_seed(seed_ref[0] + pl.program_id(0))
    y = x_ref[...] + pe_ref[...][None, :, :].astype(x_ref.dtype)
    ubits = pltpu.bitcast(pltpu.prng_random_bits(y.shape), jnp.uint32)
    keep = ubits >= jnp.uint32(keep_threshold)                  # P(keep) = 1 - p
    scale = jnp.asarray(inv_keep, dtype=y.dtype)
    o_ref[...] = (jnp.where(keep, y, jnp.zeros((), y.dtype)) * scale).astype(o_ref.dtype)


def _add_pe_dropout_bits_kernel(x_ref, pe_ref, bits_ref, o_ref, *,
                                keep_threshold, inv_keep):
    # Portable path: uniform uint32 bits streamed in (threefry, computed outside).
    y = x_ref[...] + pe_ref[...][None, :, :].astype(x_ref.dtype)
    keep = bits_ref[...] >= jnp.uint32(keep_threshold)          # P(keep) = 1 - p
    scale = jnp.asarray(inv_keep, dtype=y.dtype)
    o_ref[...] = (jnp.where(keep, y, jnp.zeros((), y.dtype)) * scale).astype(o_ref.dtype)


# ---------------------------------------------------------------------------
# Tiling: VMEM-budgeted sequence tile
# ---------------------------------------------------------------------------
_VMEM_BUDGET_BYTES = 32 << 20   # comfortable on v5e/v6e (128 MiB VMEM), leaves
                                # headroom on v7x (64 MiB physical VMEM).


def _per_row_bytes(B, D, itemsize, with_bits):
    # Per sequence row: x tile + out tile + pe tile (+ uint32 bits tile).
    row = 2 * B * D * itemsize + D * itemsize
    if with_bits:
        row += B * D * 4
    return row


def _choose_seq_tile(S, B, D, itemsize, with_bits=False):
    per_row = 2 * _per_row_bytes(B, D, itemsize, with_bits)     # double-buffered
    ts_max = max(8, _VMEM_BUDGET_BYTES // per_row)
    if S <= 8 or S % 8 != 0:
        # Small or ragged sequence: one block covering all of S (a block dim
        # equal to the full array dim is always legal).
        return S
    best = 8
    t = 8
    limit = min(S, int(ts_max))
    while t <= limit:
        if S % t == 0:
            best = t
        t += 8
    return best


def _vmem_limit_bytes(B, ts, D, itemsize, with_bits=False):
    need = 2 * ts * _per_row_bytes(B, D, itemsize, with_bits)
    return int(min(max(need + (4 << 20), 16 << 20), 44 << 20))


# ---------------------------------------------------------------------------
# Batch-leading entry point ([B, S, D]) -- the fast path
# ---------------------------------------------------------------------------
def fixed_positional_encoding_bsd(x_bsd, pe, *, dropout_p=0.1, training=False,
                                  seed=0):
    """x_bsd: [B, S, D]; pe: [S, D] (already sliced to the sequence length)."""
    B, S, D = x_bsd.shape
    pe = pe.astype(x_bsd.dtype)
    itemsize = x_bsd.dtype.itemsize
    out_shape = jax.ShapeDtypeStruct((B, S, D), x_bsd.dtype)

    if (not training) or dropout_p == 0.0:
        # Eval mode: dropout is the identity (matches PyTorch .eval()).
        ts = _choose_seq_tile(S, B, D, itemsize, with_bits=False)
        grid = (S // ts,)
        cparams = pltpu.CompilerParams(
            dimension_semantics=("parallel",),
            vmem_limit_bytes=_vmem_limit_bytes(B, ts, D, itemsize, False),
        )
        return pl.pallas_call(
            _add_pe_kernel,
            grid=grid,
            in_specs=[
                pl.BlockSpec((B, ts, D), lambda i: (0, i, 0)),
                pl.BlockSpec((ts, D), lambda i: (i, 0)),
            ],
            out_specs=pl.BlockSpec((B, ts, D), lambda i: (0, i, 0)),
            out_shape=out_shape,
            compiler_params=cparams,
        )(x_bsd, pe)

    if dropout_p >= 1.0:
        return jnp.zeros((B, S, D), x_bsd.dtype)

    p = float(dropout_p)
    keep_threshold = min(max(int(round(p * 4294967296.0)), 0), 4294967295)
    inv_keep = 1.0 / (1.0 - p)

    # TODO(synk): dropout mask is distribution-equivalent to torch.nn.Dropout
    # (keep prob 1-p, 1/(1-p) scaling), not bit-identical to torch's RNG stream.
    if jax.default_backend() == "tpu":
        # Hardware-PRNG path: zero extra HBM traffic for the random bits.
        ts = _choose_seq_tile(S, B, D, itemsize, with_bits=False)
        grid = (S // ts,)
        cparams = pltpu.CompilerParams(
            dimension_semantics=("parallel",),
            vmem_limit_bytes=_vmem_limit_bytes(B, ts, D, itemsize, False),
        )
        kernel = functools.partial(
            _add_pe_dropout_hwprng_kernel,
            keep_threshold=keep_threshold, inv_keep=inv_keep,
        )
        seed_arr = jnp.asarray([seed], dtype=jnp.int32)
        return pl.pallas_call(
            kernel,
            grid_spec=pltpu.PrefetchScalarGridSpec(
                num_scalar_prefetch=1,
                grid=grid,
                in_specs=[
                    pl.BlockSpec((B, ts, D), lambda i, s_ref: (0, i, 0)),
                    pl.BlockSpec((ts, D), lambda i, s_ref: (i, 0)),
                ],
                out_specs=pl.BlockSpec((B, ts, D), lambda i, s_ref: (0, i, 0)),
            ),
            out_shape=out_shape,
            compiler_params=cparams,
        )(seed_arr, x_bsd, pe)

    # Portable fallback (CPU / interpret): threefry bits computed outside the
    # kernel and streamed through VMEM (one extra uint32 read per element).
    ts = _choose_seq_tile(S, B, D, itemsize, with_bits=True)
    grid = (S // ts,)
    cparams = pltpu.CompilerParams(
        dimension_semantics=("parallel",),
        vmem_limit_bytes=_vmem_limit_bytes(B, ts, D, itemsize, True),
    )
    bits = jax.random.bits(jax.random.PRNGKey(seed), (B, S, D), dtype=jnp.uint32)
    kernel = functools.partial(
        _add_pe_dropout_bits_kernel,
        keep_threshold=keep_threshold, inv_keep=inv_keep,
    )
    return pl.pallas_call(
        kernel,
        grid=grid,
        in_specs=[
            pl.BlockSpec((B, ts, D), lambda i: (0, i, 0)),
            pl.BlockSpec((ts, D), lambda i: (i, 0)),
            pl.BlockSpec((B, ts, D), lambda i: (0, i, 0)),
        ],
        out_specs=pl.BlockSpec((B, ts, D), lambda i: (0, i, 0)),
        out_shape=out_shape,
        compiler_params=cparams,
    )(x_bsd, pe, bits)


# ---------------------------------------------------------------------------
# Module-convention entry point ([S, B, D], like the PyTorch forward)
# ---------------------------------------------------------------------------
def fixed_positional_encoding(x, pe_table, *, dropout_p=0.1, training=False,
                              seed=0):
    """x: [sequence length, batch size, embed dim] (module convention).

    Internally runs in [B, S, D] so the long sequence axis sits on sublanes and
    D on lanes; the boundary transposes are layout plumbing.  Callers holding
    batch-leading activations should use fixed_positional_encoding_bsd directly.
    """
    S, B, D = x.shape
    # NOTE: the add runs in x.dtype; PyTorch would promote bf16 x to the f32
    # buffer dtype (tiny precision difference, exact for f32 inputs).
    pe = pe_table[:S].astype(x.dtype)
    x_bsd = jnp.transpose(x, (1, 0, 2))
    out_bsd = fixed_positional_encoding_bsd(
        x_bsd, pe, dropout_p=dropout_p, training=training, seed=seed
    )
    return jnp.transpose(out_bsd, (1, 0, 2))


# ---------------------------------------------------------------------------
# Demo / self-test
# ---------------------------------------------------------------------------
if __name__ == "__main__":
    S, B, D = 16, 2, 128          # [seq len, batch, embed dim]; D lane-dense
    max_len = 1024
    scale_factor = 1.0

    key = jax.random.PRNGKey(0)
    x = jax.random.normal(key, (S, B, D), dtype=jnp.float32)
    pe_table = make_pe_table(D, max_len=max_len, scale_factor=scale_factor)

    # ---- eval path (dropout = identity), check against pure-JAX reference ----
    out = fixed_positional_encoding(x, pe_table, dropout_p=0.1, training=False)
    out = jax.block_until_ready(out)
    ref = x + pe_table[:S][:, None, :]
    assert out.shape == (S, B, D) and out.dtype == x.dtype
    assert jnp.allclose(out, ref, atol=1e-6, rtol=1e-6), "eval path mismatch"

    # ---- training path (dropout active): every element is 0 or ref/(1-p) ----
    p = 0.1
    out_tr = fixed_positional_encoding(x, pe_table, dropout_p=p, training=True,
                                       seed=1234)
    out_tr = jax.block_until_ready(out_tr)
    assert out_tr.shape == (S, B, D) and out_tr.dtype == x.dtype
    ref_scaled = ref / (1.0 - p)
    ok = jnp.where(out_tr == 0.0, True,
                   jnp.isclose(out_tr, ref_scaled, atol=1e-5, rtol=1e-5))
    assert bool(jnp.all(ok)), "training path values are neither 0 nor scaled"

    print("KERNEL_OK")
</pallas_src>

<mosaic_0001>
module attributes {stable_mosaic.version = 11 : i64} {
  func.func @_add_pe_kernel(%arg0: i32, %arg1: memref<2x16x128xf32, #tpu.memory_space<vmem>>, %arg2: memref<16x128xf32, #tpu.memory_space<vmem>>, %arg3: memref<2x16x128xf32, #tpu.memory_space<vmem>>) attributes {dimension_semantics = [#tpu.dimension_semantics<parallel>], iteration_bounds = array<i64: 1>, scalar_prefetch = 0 : i64, scratch_operands = 0 : i64, tpu.core_type = #tpu.core_type<tc>, window_params = [{transform_indices = @transform_0, window_bounds = array<i64: 2, 16, 128>}, {transform_indices = @transform_1, window_bounds = array<i64: 16, 128>}, {transform_indices = @transform_2, window_bounds = array<i64: 2, 16, 128>}]} {
    %c0 = arith.constant 0 : index
    %c0_0 = arith.constant 0 : index
    %c0_1 = arith.constant 0 : index
    %0 = vector.load %arg1[%c0, %c0_0, %c0_1] : memref<2x16x128xf32, #tpu.memory_space<vmem>>, vector<2x16x128xf32>
    %c0_2 = arith.constant 0 : index
    %c0_3 = arith.constant 0 : index
    %1 = vector.load %arg2[%c0_2, %c0_3] : memref<16x128xf32, #tpu.memory_space<vmem>>, vector<16x128xf32>
    %2 = vector.shape_cast %1 : vector<16x128xf32> to vector<1x16x128xf32>
    %3 = vector.broadcast %2 : vector<1x16x128xf32> to vector<2x16x128xf32>
    %4 = arith.addf %0, %3 : vector<2x16x128xf32>
    %c0_4 = arith.constant 0 : index
    %c0_5 = arith.constant 0 : index
    %c0_6 = arith.constant 0 : index
    %5 = vector.load %arg3[%c0_4, %c0_5, %c0_6] : memref<2x16x128xf32, #tpu.memory_space<vmem>>, vector<2x16x128xf32>
    tpu.vector_store %arg3[%c0_4, %c0_5, %c0_6], %4 {strides = array<i32>} : memref<2x16x128xf32, #tpu.memory_space<vmem>>, vector<2x16x128xf32>,
    return
  }
  func.func @transform_0(%arg0: i32) -> (i32, i32, i32) {
    %c0_i32 = arith.constant 0 : i32
    %c0_i32_0 = arith.constant 0 : i32
    %c0_i32_1 = arith.constant 0 : i32
    return %c0_i32, %arg0, %c0_i32_0 : i32, i32, i32
  }
  func.func @transform_1(%arg0: i32) -> (i32, i32) {
    %c0_i32 = arith.constant 0 : i32
    %c0_i32_0 = arith.constant 0 : i32
    return %arg0, %c0_i32 : i32, i32
  }
  func.func @transform_2(%arg0: i32) -> (i32, i32, i32) {
    %c0_i32 = arith.constant 0 : i32
    %c0_i32_0 = arith.constant 0 : i32
    %c0_i32_1 = arith.constant 0 : i32
    return %c0_i32, %arg0, %c0_i32_0 : i32, i32, i32
  }
}

</mosaic_0001>

<llo_original>
// kernel: tpu_custom_call.1
$region0: #{tpu_custom_call.1}
  #allocation0 [shape = 'u32[]', space=smem, size = 0x4, offset = 0x4, fixed_abs, tag = 'smem constant byte address 0x4 - core index']
  #allocation1 [shape = 'u32[72,128]{1,0:T(1,128)}', space=vmem, size = 0x9000, scoped, tag = 'internal scratch']
  %s0 = inlined_call_operand.hbm [shape: f32[2,16,128], index: 0, kind: input, shape index: {}]
  %s1 = inlined_call_operand.hbm [shape: f32[16,128], index: 1, kind: input, shape index: {}]
  %s2 = inlined_call_operand.hbm [shape: f32[2,16,128], index: 2, kind: output, shape index: {}]
  %s3 = sld [smem:[#allocation0]]
  $region26: #{tpu_custom_call.1} parent=0
    _
  %s5 = ssub.s32 1, %s3
  %s6 = scalar_select 0, %s5, %s3
  $region1: #{tpu_custom_call.1} parent=0
    #allocation2 [shape = 'u8[16384]{0}', space=vmem, size = 0x4000, scoped, tag = 'input window, operand 0, single buffered']
    #allocation3 [shape = 's32[1]{0}', space=sflag, size = 0x4, scoped, tag = 'scoped memory for tpu_custom_call.1']
    #allocation4 [shape = 's32[1]{0}', space=sflag, size = 0x4, scoped, tag = 'scoped memory for tpu_custom_call.1']
    #allocation5 [shape = 'u8[8192]{0}', space=vmem, size = 0x2000, scoped, tag = 'input window, operand 1, single buffered']
    #allocation6 [shape = 's32[1]{0}', space=sflag, size = 0x4, scoped, tag = 'scoped memory for tpu_custom_call.1']
    #allocation7 [shape = 'u8[16384]{0}', space=vmem, size = 0x4000, scoped, tag = 'output window, operand 0, single buffered']
    %7 = vsyncpa [#allocation3], 0
    %8 = vsyncpa [#allocation6], 0
    %9 = vsyncpa [#allocation4], 0
    // Predicated region
    $region2: #{tpu_custom_call.1} parent=1 // pred_check
      _
    $region3: #{tpu_custom_call.1} parent=1 // pred_check_branch
      %11 = sbr.rel (0) target = $region5
    $region4: #{tpu_custom_call.1} parent=1 // pred_region
      %13 = vsyncadd [#allocation3], 0
      %s14 = sshll.u32 %s0, 4
      %s15 = int_to_ptr.hbm [resolvable:$true] %s14
      %s16 = sshll.u32 [#allocation2], 4
      %s17 = int_to_ptr.vmem [resolvable:$true] %s16
      %22 = dma.hbm_to_vmem [thread:$0]  %s15, 512, %s17, [#allocation3], 128, 128, 8
    $region5: #{tpu_custom_call.1} parent=1 // pred_fallthru
      _
    // Predicated region
    $region6: #{tpu_custom_call.1} parent=1 // pred_check
      _
    $region7: #{tpu_custom_call.1} parent=1 // pred_check_branch
      %24 = sbr.rel (0) target = $region9
    $region8: #{tpu_custom_call.1} parent=1 // pred_region
      %26 = vsyncadd [#allocation6], 0
      %s27 = sshll.u32 %s1, 4
      %s28 = int_to_ptr.hbm [resolvable:$true] %s27
      %s29 = sshll.u32 [#allocation5], 4
      %s30 = int_to_ptr.vmem [resolvable:$true] %s29
      %35 = dma.hbm_to_vmem [thread:$0]  %s28, 256, %s30, [#allocation6], 128, 128, 8
    $region9: #{tpu_custom_call.1} parent=1 // pred_fallthru
      _
    // Predicated region
    $region10: #{tpu_custom_call.1} parent=1 // pred_check
      _
    $region11: #{tpu_custom_call.1} parent=1 // pred_check_branch
      %37 = sbr.rel (0) target = $region13
    $region12: #{tpu_custom_call.1} parent=1 // pred_region
      %39 = dma.done [#allocation3], 512
    $region13: #{tpu_custom_call.1} parent=1 // pred_fallthru
      _
    // Predicated region
    $region14: #{tpu_custom_call.1} parent=1 // pred_check
      _
    $region15: #{tpu_custom_call.1} parent=1 // pred_check_branch
      %41 = sbr.rel (0) target = $region17
    $region16: #{tpu_custom_call.1} parent=1 // pred_region
      %43 = dma.done [#allocation6], 256
    $region17: #{tpu_custom_call.1} parent=1 // pred_fallthru
      _
    %v44 = vld [vmem:[#allocation2] sm:$0xff]
    %v45 = vld [vmem:[#allocation2 + $0x8] sm:$0xff]
    %v46 = vld [vmem:[#allocation2 + $0x10] sm:$0xff]
    %v47 = vld [vmem:[#allocation2 + $0x18] sm:$0xff]
    %v48 = vld [vmem:[#allocation5] sm:$0xff]
    %v49 = vld [vmem:[#allocation5 + $0x8] sm:$0xff]
    %v50 = vadd.f32 %v44, %v48
    %v51 = vadd.f32 %v45, %v49
    %v52 = vadd.f32 %v46, %v48
    %v53 = vadd.f32 %v47, %v49
    %54 = vst [vmem:[#allocation7] sm:$0xff] %v50
    %55 = vst [vmem:[#allocation7 + $0x8] sm:$0xff] %v51
    %56 = vst [vmem:[#allocation7 + $0x10] sm:$0xff] %v52
    %57 = vst [vmem:[#allocation7 + $0x18] sm:$0xff] %v53
    // Predicated region
    $region18: #{tpu_custom_call.1} parent=1 // pred_check
      _
    $region19: #{tpu_custom_call.1} parent=1 // pred_check_branch
      %59 = sbr.rel (0) target = $region21
    $region20: #{tpu_custom_call.1} parent=1 // pred_region
      %61 = vsyncadd [#allocation4], 0
      %s62 = sshll.u32 [#allocation7], 4
      %s63 = int_to_ptr.vmem [resolvable:$true] %s62
      %s64 = sshll.u32 %s2, 4
      %s65 = int_to_ptr.hbm [resolvable:$true] %s64
      %70 = dma.vmem_to_hbm [thread:$0]  %s63, 512, %s65, [#allocation4], 128, 128, 8
    $region21: #{tpu_custom_call.1} parent=1 // pred_fallthru
      _
    // Predicated region
    $region22: #{tpu_custom_call.1} parent=1 // pred_check
      _
    $region23: #{tpu_custom_call.1} parent=1 // pred_check_branch
      %72 = sbr.rel (0) target = $region25
    $region24: #{tpu_custom_call.1} parent=1 // pred_region
      %74 = dma.done [#allocation4], 512
    $region25: #{tpu_custom_call.1} parent=1 // pred_fallthru
      _
    %75 = vsyncpa [#allocation3], 1
    %76 = vsyncpa [#allocation6], 1
    %77 = vsyncpa [#allocation4], 1

</llo_original>
